<compile_context>
chip_gen: v7x
topology: tpu7x:2x2x1
jax: 0.10.0
libtpu: 0.0.40
codegen_flags: <defaults>
</compile_context>

<pallas_src>
import jax
import jax.numpy as jnp
from jax.experimental import pallas as pl
from jax.experimental.pallas import tpu as pltpu


def _embed_action_kernel(pidx_ref, table_ref, out_ref):
    """One batch tile.

    pidx_ref:  (TP, G) int32 — G packed action indices per output row, each
                               pre-offset by g * num_actions in the wrapper.
    table_ref: (G*A, G*D)    — block-diagonal replicated table (VMEM-resident,
                               identical block at every grid step).
    out_ref:   (TP, G*D)     — lane-dense packed output tile.
    """
    pidx = pidx_ref[...]
    table = table_ref[...]
    tp, g = pidx.shape
    ga = table.shape[0]

    # One-hot over the packed action axis: hit[p, j] is True iff some slot g of
    # packed row p selects block-row j.  Slot ranges [g*A, (g+1)*A) are
    # disjoint, so the G compares never collide.
    lane = jax.lax.broadcasted_iota(jnp.int32, (tp, ga), 1)
    hit = lane == pidx[:, 0:1]
    for gg in range(1, g):
        hit = jnp.logical_or(hit, lane == pidx[:, gg:gg + 1])
    onehot = hit.astype(table.dtype)

    # MXU gather: (TP, G*A) @ (G*A, G*D) -> (TP, G*D), lane-dense result.
    out = jnp.dot(onehot, table,
                  precision=jax.lax.Precision.HIGHEST,
                  preferred_element_type=jnp.float32)
    out_ref[...] = out.astype(out_ref.dtype)


def embed_action(inp, action_embedding, *, target_tile_bytes=512 * 1024):
    """Pallas equivalent of EmbedAction.forward.

    Args:
      inp: (B, K) array; inp[:, 0] holds the action indices.
      action_embedding: (num_actions, latent_dim) parameter.
      target_tile_bytes: target size of one output tile (per grid step).

    Returns:
      (B, latent_dim) gathered embeddings.
    """
    B = inp.shape[0]
    A, D = action_embedding.shape
    dtype = action_embedding.dtype
    itemsize = jnp.dtype(dtype).itemsize

    # Lane-packing factor: pack G batch rows per output row when D divides 128.
    G = 128 // D if (D < 128 and 128 % D == 0) else 1

    # Indices: column 0, cast to int32, clamped.
    # TODO(synk): PyTorch nn.Embedding raises on out-of-range indices; we clamp.
    idx = jnp.clip(inp[:, 0].astype(jnp.int32), 0, A - 1)

    # ---- tile sizing -------------------------------------------------------
    granule = 8 * G                              # TP must be a multiple of 8
    row_bytes = D * itemsize
    tb = target_tile_bytes // row_bytes          # rows per tile (target)
    tb = max(granule, min(8192, tb))
    tb = (tb // granule) * granule
    B8 = pl.cdiv(B, granule) * granule           # batch rounded to granule
    if B8 <= tb:
        TB = B8                                  # single tile
    else:
        n = pl.cdiv(B8, tb)                      # >= 2 tiles (keeps both v7x TCs busy)
        TB = pl.cdiv(pl.cdiv(B8, n), granule) * granule
    B_pad = pl.cdiv(B8, TB) * TB
    n_tiles = B_pad // TB
    TP = TB // G

    # ---- pack indices + table ---------------------------------------------
    idx_pad = jnp.pad(idx, (0, B_pad - B)) if B_pad != B else idx
    # pidx[p, g] = idx[p*G + g] + g*A  (offset selects slot g's diagonal block)
    pidx = idx_pad.reshape(B_pad // G, G) + jnp.arange(G, dtype=jnp.int32) * A

    if G > 1:
        table_blk = jnp.kron(jnp.eye(G, dtype=dtype), action_embedding)  # (G*A, G*D)
    else:
        table_blk = action_embedding

    # ---- VMEM budget (generation-aware cap) --------------------------------
    try:
        vmem_cap = pltpu.get_tpu_info().vmem_capacity_bytes
    except Exception:
        vmem_cap = 64 * 1024 * 1024              # conservative (v7x per-TC)
    table_bytes = (G * A) * (G * D) * itemsize
    idx_blk_bytes = TP * 128 * 4                 # lane dim pads to 128 in VMEM
    out_blk_bytes = TP * (G * D) * itemsize
    vmem_needed = (2 * table_bytes               # covers the double-buffered fallback
                   + 2 * (idx_blk_bytes + out_blk_bytes)
                   + 2 * 1024 * 1024)
    vmem_limit = int(min(vmem_cap - 8 * 1024 * 1024,
                         max(16 * 1024 * 1024, vmem_needed)))

    # ---- pallas_call --------------------------------------------------------
    def make_call(table_spec):
        return pl.pallas_call(
            _embed_action_kernel,
            grid=(n_tiles,),
            in_specs=[
                pl.BlockSpec((TP, G), lambda b: (b, 0)),     # packed indices
                table_spec,                                   # replicated table
            ],
            out_specs=pl.BlockSpec((TP, G * D), lambda b: (b, 0)),
            out_shape=jax.ShapeDtypeStruct((B_pad // G, G * D), dtype),
            compiler_params=pltpu.CompilerParams(
                dimension_semantics=("parallel",),
                vmem_limit_bytes=vmem_limit),
        )

    try:
        # Table block is identical at every grid step -> single-buffer it.
        spec = pl.BlockSpec(table_blk.shape, lambda b: (0, 0),
                            pipeline_mode=pl.Buffered(buffer_count=1))
        out_packed = make_call(spec)(pidx, table_blk)
    except Exception:
        # Fallback: default (double-buffered) table spec.
        spec = pl.BlockSpec(table_blk.shape, lambda b: (0, 0))
        out_packed = make_call(spec)(pidx, table_blk)

    out = out_packed.reshape(B_pad, D)           # contiguous view, free
    return out if B_pad == B else out[:B]


if __name__ == "__main__":
    key = jax.random.PRNGKey(0)
    k_emb, k_i1, k_i2, k_emb2, k_i3 = jax.random.split(key, 5)

    # Case 1: module-sized example — num_actions=10, latent_dim=32, batch=2.
    num_actions, latent_dim = 10, 32
    action_embedding = jax.random.normal(k_emb, (num_actions, latent_dim), jnp.float32)
    batch = 2
    idx_vals = jax.random.randint(k_i1, (batch,), 0, num_actions)
    inp = jnp.stack([idx_vals.astype(jnp.float32),
                     jnp.zeros((batch,), jnp.float32)], axis=1)
    out = jax.block_until_ready(embed_action(inp, action_embedding))
    ref = action_embedding[idx_vals]
    assert out.shape == (batch, latent_dim)
    assert jnp.allclose(out, ref), "mismatch (B=2, D=32)"

    # Case 2: multi-tile + padding path (small tile target forces grid > 1).
    batch2 = 130
    idx_vals2 = jax.random.randint(k_i2, (batch2,), 0, num_actions)
    inp2 = jnp.stack([idx_vals2.astype(jnp.float32),
                      jnp.zeros((batch2,), jnp.float32)], axis=1)
    out2 = jax.block_until_ready(
        embed_action(inp2, action_embedding, target_tile_bytes=8 * 1024))
    ref2 = action_embedding[idx_vals2]
    assert out2.shape == (batch2, latent_dim)
    assert jnp.allclose(out2, ref2), "mismatch (B=130, D=32, multi-tile)"

    # Case 3: latent_dim already lane-dense (G=1 fallback path).
    action_embedding3 = jax.random.normal(k_emb2, (7, 128), jnp.float32)
    batch3 = 10
    idx_vals3 = jax.random.randint(k_i3, (batch3,), 0, 7)
    inp3 = jnp.stack([idx_vals3.astype(jnp.float32),
                      jnp.zeros((batch3,), jnp.float32)], axis=1)
    out3 = jax.block_until_ready(embed_action(inp3, action_embedding3))
    ref3 = action_embedding3[idx_vals3]
    assert out3.shape == (batch3, 128)
    assert jnp.allclose(out3, ref3), "mismatch (B=10, D=128)"

    print("KERNEL_OK")
</pallas_src>

<mosaic_0001>
module attributes {stable_mosaic.version = 11 : i64} {
  func.func @_embed_action_kernel(%arg0: i32, %arg1: memref<8x4xi32, #tpu.memory_space<vmem>>, %arg2: memref<40x128xf32, #tpu.memory_space<vmem>>, %arg3: memref<8x128xf32, #tpu.memory_space<vmem>>) attributes {dimension_semantics = [#tpu.dimension_semantics<parallel>], iteration_bounds = array<i64: 1>, scalar_prefetch = 0 : i64, scratch_operands = 0 : i64, tpu.core_type = #tpu.core_type<tc>, window_params = [{transform_indices = @transform_0, window_bounds = array<i64: 8, 4>}, {pipeline_mode = #tpu.pipeline_mode<synchronous>, transform_indices = @transform_1, window_bounds = array<i64: 40, 128>}, {transform_indices = @transform_2, window_bounds = array<i64: 8, 128>}]} {
    %c0 = arith.constant 0 : index
    %c0_0 = arith.constant 0 : index
    %0 = vector.load %arg1[%c0, %c0_0] : memref<8x4xi32, #tpu.memory_space<vmem>>, vector<8x4xi32>
    %c0_1 = arith.constant 0 : index
    %c0_2 = arith.constant 0 : index
    %1 = vector.load %arg2[%c0_1, %c0_2] : memref<40x128xf32, #tpu.memory_space<vmem>>, vector<40x128xf32>
    %2 = tpu.iota {dimensions = array<i32: 1>} : vector<8x40xi32>
    %3 = vector.extract_strided_slice %0 {offsets = [0, 0], sizes = [8, 1], strides = [1, 1]} : vector<8x4xi32> to vector<8x1xi32>
    %4 = vector.broadcast %3 : vector<8x1xi32> to vector<8x40xi32>
    %5 = arith.cmpi eq, %2, %4 : vector<8x40xi32>
    %6 = vector.extract_strided_slice %0 {offsets = [0, 1], sizes = [8, 1], strides = [1, 1]} : vector<8x4xi32> to vector<8x1xi32>
    %7 = vector.broadcast %6 : vector<8x1xi32> to vector<8x40xi32>
    %8 = arith.cmpi eq, %2, %7 : vector<8x40xi32>
    %9 = arith.ori %5, %8 : vector<8x40xi1>
    %10 = vector.extract_strided_slice %0 {offsets = [0, 2], sizes = [8, 1], strides = [1, 1]} : vector<8x4xi32> to vector<8x1xi32>
    %11 = vector.broadcast %10 : vector<8x1xi32> to vector<8x40xi32>
    %12 = arith.cmpi eq, %2, %11 : vector<8x40xi32>
    %13 = arith.ori %9, %12 : vector<8x40xi1>
    %14 = vector.extract_strided_slice %0 {offsets = [0, 3], sizes = [8, 1], strides = [1, 1]} : vector<8x4xi32> to vector<8x1xi32>
    %15 = vector.broadcast %14 : vector<8x1xi32> to vector<8x40xi32>
    %16 = arith.cmpi eq, %2, %15 : vector<8x40xi32>
    %17 = arith.ori %13, %16 : vector<8x40xi1>
    %18 = arith.extui %17 : vector<8x40xi1> to vector<8x40xi32>
    %19 = arith.sitofp %18 : vector<8x40xi32> to vector<8x40xf32>
    %cst = arith.constant dense<0.000000e+00> : vector<8x128xf32>
    %20 = tpu.matmul %19, %1, %cst {dimension_numbers = #tpu.dot_dimension_numbers<[1], [0], [0], [1], [0, 0, 1, 1], [], []>, precision = #tpu.contract_precision<fp32>} : vector<8x40xf32>, vector<40x128xf32>, vector<8x128xf32> -> vector<8x128xf32>
    %c0_3 = arith.constant 0 : index
    %c0_4 = arith.constant 0 : index
    %21 = vector.load %arg3[%c0_3, %c0_4] : memref<8x128xf32, #tpu.memory_space<vmem>>, vector<8x128xf32>
    tpu.vector_store %arg3[%c0_3, %c0_4], %20 {strides = array<i32>} : memref<8x128xf32, #tpu.memory_space<vmem>>, vector<8x128xf32>,
    return
  }
  func.func @transform_0(%arg0: i32) -> (i32, i32) {
    %c0_i32 = arith.constant 0 : i32
    %c0_i32_0 = arith.constant 0 : i32
    return %arg0, %c0_i32 : i32, i32
  }
  func.func @transform_1(%arg0: i32) -> (i32, i32) {
    %c0_i32 = arith.constant 0 : i32
    %c0_i32_0 = arith.constant 0 : i32
    %c0_i32_1 = arith.constant 0 : i32
    return %c0_i32, %c0_i32_0 : i32, i32
  }
  func.func @transform_2(%arg0: i32) -> (i32, i32) {
    %c0_i32 = arith.constant 0 : i32
    %c0_i32_0 = arith.constant 0 : i32
    return %arg0, %c0_i32 : i32, i32
  }
}

module attributes {stable_mosaic.version = 11 : i64} {
  func.func @_embed_action_kernel(%arg0: i32, %arg1: memref<8x4xi32, #tpu.memory_space<vmem>>, %arg2: memref<40x128xf32, #tpu.memory_space<vmem>>, %arg3: memref<8x128xf32, #tpu.memory_space<vmem>>) attributes {dimension_semantics = [#tpu.dimension_semantics<parallel>], iteration_bounds = array<i64: 1>, scalar_prefetch = 0 : i64, scratch_operands = 0 : i64, tpu.core_type = #tpu.core_type<tc>, window_params = [{transform_indices = @transform_0, window_bounds = array<i64: 8, 4>}, {pipeline_mode = #tpu.pipeline_mode<synchronous>, transform_indices = @transform_1, window_bounds = array<i64: 40, 128>}, {transform_indices = @transform_2, window_bounds = array<i64: 8, 128>}]} {
    %c0 = arith.constant 0 : index
    %c0_0 = arith.constant 0 : index
    %0 = vector.load %arg1[%c0, %c0_0] : memref<8x4xi32, #tpu.memory_space<vmem>>, vector<8x4xi32>
    %c0_1 = arith.constant 0 : index
    %c0_2 = arith.constant 0 : index
    %1 = vector.load %arg2[%c0_1, %c0_2] : memref<40x128xf32, #tpu.memory_space<vmem>>, vector<40x128xf32>
    %2 = tpu.iota {dimensions = array<i32: 1>} : vector<8x40xi32>
    %3 = vector.extract_strided_slice %0 {offsets = [0, 0], sizes = [8, 1], strides = [1, 1]} : vector<8x4xi32> to vector<8x1xi32>
    %4 = vector.broadcast %3 : vector<8x1xi32> to vector<8x40xi32>
    %5 = arith.cmpi eq, %2, %4 : vector<8x40xi32>
    %6 = vector.extract_strided_slice %0 {offsets = [0, 1], sizes = [8, 1], strides = [1, 1]} : vector<8x4xi32> to vector<8x1xi32>
    %7 = vector.broadcast %6 : vector<8x1xi32> to vector<8x40xi32>
    %8 = arith.cmpi eq, %2, %7 : vector<8x40xi32>
    %9 = arith.ori %5, %8 : vector<8x40xi1>
    %10 = vector.extract_strided_slice %0 {offsets = [0, 2], sizes = [8, 1], strides = [1, 1]} : vector<8x4xi32> to vector<8x1xi32>
    %11 = vector.broadcast %10 : vector<8x1xi32> to vector<8x40xi32>
    %12 = arith.cmpi eq, %2, %11 : vector<8x40xi32>
    %13 = arith.ori %9, %12 : vector<8x40xi1>
    %14 = vector.extract_strided_slice %0 {offsets = [0, 3], sizes = [8, 1], strides = [1, 1]} : vector<8x4xi32> to vector<8x1xi32>
    %15 = vector.broadcast %14 : vector<8x1xi32> to vector<8x40xi32>
    %16 = arith.cmpi eq, %2, %15 : vector<8x40xi32>
    %17 = arith.ori %13, %16 : vector<8x40xi1>
    %18 = arith.extui %17 : vector<8x40xi1> to vector<8x40xi32>
    %19 = arith.sitofp %18 : vector<8x40xi32> to vector<8x40xf32>
    %cst = arith.constant dense<0.000000e+00> : vector<8x128xf32>
    %20 = tpu.matmul %19, %1, %cst {dimension_numbers = #tpu.dot_dimension_numbers<[1], [0], [0], [1], [0, 0, 1, 1], [], []>, precision = #tpu.contract_precision<fp32>} : vector<8x40xf32>, vector<40x128xf32>, vector<8x128xf32> -> vector<8x128xf32>
    %c0_3 = arith.constant 0 : index
    %c0_4 = arith.constant 0 : index
    %21 = vector.load %arg3[%c0_3, %c0_4] : memref<8x128xf32, #tpu.memory_space<vmem>>, vector<8x128xf32>
    tpu.vector_store %arg3[%c0_3, %c0_4], %20 {strides = array<i32>} : memref<8x128xf32, #tpu.memory_space<vmem>>, vector<8x128xf32>,
    return
  }
  func.func @transform_0(%arg0: i32) -> (i32, i32) {
    %c0_i32 = arith.constant 0 : i32
    %c0_i32_0 = arith.constant 0 : i32
    return %arg0, %c0_i32 : i32, i32
  }
  func.func @transform_1(%arg0: i32) -> (i32, i32) {
    %c0_i32 = arith.constant 0 : i32
    %c0_i32_0 = arith.constant 0 : i32
    %c0_i32_1 = arith.constant 0 : i32
    return %c0_i32, %c0_i32_0 : i32, i32
  }
  func.func @transform_2(%arg0: i32) -> (i32, i32) {
    %c0_i32 = arith.constant 0 : i32
    %c0_i32_0 = arith.constant 0 : i32
    return %arg0, %c0_i32 : i32, i32
  }
}

</mosaic_0001>

<llo_original>
// kernel: tpu_custom_call.1
$region0: #{tpu_custom_call.1}
  #allocation0 [shape = 'u32[]', space=smem, size = 0x4, offset = 0x4, fixed_abs, tag = 'smem constant byte address 0x4 - core index']
  #allocation1 [shape = 'u32[144,128]{1,0:T(1,128)}', space=vmem, size = 0x12000, scoped, tag = 'internal scratch']
  %s0 = inlined_call_operand.vmem [shape: s32[8,4], index: 0, kind: input, shape index: {}]
  %s1 = inlined_call_operand.hbm [shape: f32[40,128], index: 1, kind: input, shape index: {}]
  %s2 = inlined_call_operand.hbm [shape: f32[8,128], index: 2, kind: output, shape index: {}]
  %s3 = sld [smem:[#allocation0]]
  $region22: #{tpu_custom_call.1} parent=0
    _
  %s5 = ssub.s32 1, %s3
  %s6 = scalar_select 0, %s5, %s3
  $region1: #{tpu_custom_call.1} parent=0
    #allocation2 [shape = 'u8[20480]{0}', space=vmem, size = 0x5000, scoped, tag = 'input window, operand 1, single buffered']
    #allocation3 [shape = 's32[1]{0}', space=sflag, size = 0x4, scoped, tag = 'scoped memory for tpu_custom_call.1']
    #allocation4 [shape = 's32[1]{0}', space=sflag, size = 0x4, scoped, tag = 'scoped memory for tpu_custom_call.1']
    #allocation5 [shape = 'u8[4096]{0}', space=vmem, size = 0x1000, scoped, tag = 'output window, operand 0, single buffered']
    %7 = vsyncpa [#allocation3], 0
    %8 = vsyncpa [#allocation4], 0
    // Predicated region
    $region2: #{tpu_custom_call.1} parent=1 // pred_check
      _
    $region3: #{tpu_custom_call.1} parent=1 // pred_check_branch
      %10 = sbr.rel (0) target = $region5
    $region4: #{tpu_custom_call.1} parent=1 // pred_region
      _
    $region5: #{tpu_custom_call.1} parent=1 // pred_fallthru
      _
    // Predicated region
    $region6: #{tpu_custom_call.1} parent=1 // pred_check
      _
    $region7: #{tpu_custom_call.1} parent=1 // pred_check_branch
      %12 = sbr.rel (0) target = $region9
    $region8: #{tpu_custom_call.1} parent=1 // pred_region
      %s14 = ssub.s32 640, 640
      %15 = vsyncadd [#allocation3], %s14
      %s16 = sshll.u32 [#allocation2], 4
      %s17 = int_to_ptr.vmem [resolvable:$true] %s16
      %22 = dma.hbm_to_vmem [thread:$0]  %s1, 640, %s17, [#allocation3], 128, 128, 8
    $region9: #{tpu_custom_call.1} parent=1 // pred_fallthru
      _
    // Predicated region
    $region10: #{tpu_custom_call.1} parent=1 // pred_check
      _
    $region11: #{tpu_custom_call.1} parent=1 // pred_check_branch
      %24 = sbr.rel (0) target = $region13
    $region12: #{tpu_custom_call.1} parent=1 // pred_region
      %25 = dma.done [#allocation3], 640
    $region13: #{tpu_custom_call.1} parent=1 // pred_fallthru
      _
    %v26 = vld [vmem:[%s0] sm:$0xff]
    %v27 = vld [vmem:[#allocation2] sm:$0xff]
    %v28 = vld [vmem:[#allocation2 + $0x8] sm:$0xff]
    %v29 = vld [vmem:[#allocation2 + $0x10] sm:$0xff]
    %v30 = vld [vmem:[#allocation2 + $0x18] sm:$0xff]
    %v31 = vld [vmem:[#allocation2 + $0x20] sm:$0xff]
    %v32 = vlaneseq
    %v33 = vand.u32 %v32, 127
    %34 = vset.pattern.permute.xlu0 0
    %35 = vperm.xlu0 %34, %v26
    %v36 = vpop.permute.xlu0 %35
    %vm37 = vcmp.eq.s32.totalorder %v33, %v36
    %38 = vset.pattern.permute.xlu0 1
    %39 = vperm.xlu0 %38, %v26
    %v40 = vpop.permute.xlu0 %39
    %vm41 = vcmp.eq.s32.totalorder %v33, %v40
    %vm42 = vmor %vm37, %vm41
    %43 = vset.pattern.permute.xlu0 2
    %44 = vperm.xlu0 %43, %v26
    %v45 = vpop.permute.xlu0 %44
    %vm46 = vcmp.eq.s32.totalorder %v33, %v45
    %vm47 = vmor %vm42, %vm46
    %48 = vset.pattern.permute.xlu0 3
    %49 = vperm.xlu0 %48, %v26
    %v50 = vpop.permute.xlu0 %49
    %vm51 = vcmp.eq.s32.totalorder %v33, %v50
    %vm52 = vmor %vm47, %vm51
    %v53 = vsel %vm52, 1, 0
    %v54 = vcvt.s32.f32 %v53
    %vm55 = vcmask 326656
    %v57 = vsel %vm55, %v54, 0
    %59 = vmatprep.subr.mxu0 0.0
    %v60 = vand.u32 %v27, 4294901760
    %61 = vmatpush1.msra.mxu0 %v60
    %62 = vmatprep.subr.mxu0 0.0
    %v63 = vand.u32 %v28, 4294901760
    %64 = vmatpush1.msra.mxu0 %v63
    %65 = vmatprep.subr.mxu0 0.0
    %v66 = vand.u32 %v29, 4294901760
    %67 = vmatpush1.msra.mxu0 %v66
    %68 = vmatprep.subr.mxu0 0.0
    %v69 = vand.u32 %v30, 4294901760
    %70 = vmatpush1.msra.mxu0 %v69
    %71 = vmatprep.subr.mxu0 0.0
    %v72 = vand.u32 %v31, 4294901760
    %73 = vmatpush1.msra.mxu0 %v72
    %74 = vmatprep.subr.mxu0 0.0
    %75 = vmatpush1.msra.mxu0 0.0
    %76 = vmatprep.subr.mxu0 0.0
    %77 = vmatpush1.msra.mxu0 0.0
    %78 = vmatprep.subr.mxu0 0.0
    %79 = vmatpush1.msra.mxu0 0.0
    %80 = vmatprep.subr.mxu0 0.0
    %81 = vmatpush1.msra.mxu0 0.0
    %82 = vmatprep.subr.mxu0 0.0
    %83 = vmatpush1.msra.mxu0 0.0
    %84 = vmatprep.subr.mxu0 0.0
    %85 = vmatpush1.msra.mxu0 0.0
    %86 = vmatprep.subr.mxu0 0.0
    %87 = vmatpush1.msra.mxu0 0.0
    %88 = vmatprep.subr.mxu0 0.0
    %89 = vmatpush1.msra.mxu0 0.0
    %90 = vmatprep.subr.mxu0 0.0
    %91 = vmatpush1.msra.mxu0 0.0
    %92 = vmatprep.subr.mxu0 0.0
    %93 = vmatpush1.msra.mxu0 0.0
    %94 = vmatprep.subr.mxu0 0.0
    %95 = vmatpush1.msra.mxu0 0.0
    %96 = vmatprep.subr.mxu0 0.0
    %97 = vmatpush1.msra.mxu0 0.0
    %98 = vmatprep.subr.mxu0 0.0
    %99 = vmatpush1.msra.mxu0 0.0
    %100 = vmatprep.subr.mxu0 0.0
    %101 = vmatpush1.msra.mxu0 0.0
    %102 = vmatprep.subr.mxu0 0.0
    %103 = vmatpush1.msra.mxu0 0.0
    %104 = vmatprep.subr.mxu0 0.0
    %105 = vmatpush1.msra.mxu0 0.0
    %106 = vmatprep.subr.mxu0 0.0
    %107 = vmatpush1.msra.mxu0 0.0
    %108 = vmatprep.subr.mxu0 0.0
    %109 = vmatpush1.msra.mxu0 0.0
    %110 = vmatprep.subr.mxu0 0.0
    %111 = vmatpush1.msra.mxu0 0.0
    %112 = vmatprep.subr.mxu0 0.0
    %113 = vmatpush1.msra.mxu0 0.0
    %114 = vmatprep.subr.mxu0 0.0
    %115 = vmatpush1.msra.mxu0 0.0
    %116 = vmatprep.subr.mxu0 0.0
    %117 = vmatpush1.msra.mxu0 0.0
    %118 = vmatprep.subr.mxu0 0.0
    %119 = vmatpush1.msra.mxu0 0.0
    %120 = vmatprep.subr.mxu0 0.0
    %121 = vmatpush1.msra.mxu0 0.0
    %122 = vmatprep.subr.mxu0 0.0
    %123 = vmatpush1.msra.mxu0 0.0
    %124 = vmatprep.subr.mxu0 0.0
    %125 = vmatpush1.msra.mxu0 0.0
    %126 = vmatprep.subr.mxu0 0.0
    %127 = vmatpush1.msra.mxu0 0.0
    %128 = vmatprep.mubr.f32.mxu0 0.0
    %v129 = vand.u32 %v57, 4294901760
    %v130 = vsub.f32 %v57, %v129
    %v131 = vand.u32 %v130, 4294901760
    %v132 = vsub.f32 %v130, %v131
    %v133 = vand.u32 %v132, 4294901760
    %134 = vmatmul.mubr.f32.gmra.mrb[0].mxu0 %v133
    %v135 = vpop.f32.mrb[0].mxu0
    %v136 = vadd.f32 0.0, %v135
    %v137 = vpop.f32.mrb[0].mxu0
    %138 = vdwg.mxu0
    %139 = vmatprep.subr.mxu0 0.0
    %v140 = vand.u32 %v27, 4294901760
    %v141 = vsub.f32 %v27, %v140
    %v142 = vand.u32 %v141, 4294901760
    %v143 = vsub.f32 %v141, %v142
    %v144 = vand.u32 %v143, 4294901760
    %145 = vmatpush1.msra.mxu0 %v144
    %146 = vmatprep.subr.mxu0 0.0
    %v147 = vand.u32 %v28, 4294901760
    %v148 = vsub.f32 %v28, %v147
    %v149 = vand.u32 %v148, 4294901760
    %v150 = vsub.f32 %v148, %v149
    %v151 = vand.u32 %v150, 4294901760
    %152 = vmatpush1.msra.mxu0 %v151
    %153 = vmatprep.subr.mxu0 0.0
    %v154 = vand.u32 %v29, 4294901760
    %v155 = vsub.f32 %v29, %v154
    %v156 = vand.u32 %v155, 4294901760
    %v157 = vsub.f32 %v155, %v156
    %v158 = vand.u32 %v157, 4294901760
    %159 = vmatpush1.msra.mxu0 %v158
    %160 = vmatprep.subr.mxu0 0.0
    %v161 = vand.u32 %v30, 4294901760
    %v162 = vsub.f32 %v30, %v161
    %v163 = vand.u32 %v162, 4294901760
    %v164 = vsub.f32 %v162, %v163
    %v165 = vand.u32 %v164, 4294901760
    %166 = vmatpush1.msra.mxu0 %v165
    %167 = vmatprep.subr.mxu0 0.0
    %v168 = vand.u32 %v31, 4294901760
    %v169 = vsub.f32 %v31, %v168
    %v170 = vand.u32 %v169, 4294901760
    %v171 = vsub.f32 %v169, %v170
    %v172 = vand.u32 %v171, 4294901760
    %173 = vmatpush1.msra.mxu0 %v172
    %174 = vmatprep.subr.mxu0 0.0
    %175 = vmatpush1.msra.mxu0 0.0
    %176 = vmatprep.subr.mxu0 0.0
    %177 = vmatpush1.msra.mxu0 0.0
    %178 = vmatprep.subr.mxu0 0.0
    %179 = vmatpush1.msra.mxu0 0.0
    %180 = vmatprep.subr.mxu0 0.0
    %181 = vmatpush1.msra.mxu0 0.0
    %182 = vmatprep.subr.mxu0 0.0
    %183 = vmatpush1.msra.mxu0 0.0
    %184 = vmatprep.subr.mxu0 0.0
    %185 = vmatpush1.msra.mxu0 0.0
    %186 = vmatprep.subr.mxu0 0.0
    %187 = vmatpush1.msra.mxu0 0.0
    %188 = vmatprep.subr.mxu0 0.0
    %189 = vmatpush1.msra.mxu0 0.0
    %190 = vmatprep.subr.mxu0 0.0
    %191 = vmatpush1.msra.mxu0 0.0
    %192 = vmatprep.subr.mxu0 0.0
    %193 = vmatpush1.msra.mxu0 0.0
    %194 = vmatprep.subr.mxu0 0.0
    %195 = vmatpush1.msra.mxu0 0.0
    %196 = vmatprep.subr.mxu0 0.0
    %197 = vmatpush1.msra.mxu0 0.0
    %198 = vmatprep.subr.mxu0 0.0
    %199 = vmatpush1.msra.mxu0 0.0
    %200 = vmatprep.subr.mxu0 0.0
    %201 = vmatpush1.msra.mxu0 0.0
    %202 = vmatprep.subr.mxu0 0.0
    %203 = vmatpush1.msra.mxu0 0.0
    %204 = vmatprep.subr.mxu0 0.0
    %205 = vmatpush1.msra.mxu0 0.0
    %206 = vmatprep.subr.mxu0 0.0
    %207 = vmatpush1.msra.mxu0 0.0
    %208 = vmatprep.subr.mxu0 0.0
    %209 = vmatpush1.msra.mxu0 0.0
    %210 = vmatprep.subr.mxu0 0.0
    %211 = vmatpush1.msra.mxu0 0.0
    %212 = vmatprep.subr.mxu0 0.0
    %213 = vmatpush1.msra.mxu0 0.0
    %214 = vmatprep.subr.mxu0 0.0
    %215 = vmatpush1.msra.mxu0 0.0
    %216 = vmatprep.subr.mxu0 0.0
    %217 = vmatpush1.msra.mxu0 0.0
    %218 = vmatprep.subr.mxu0 0.0
    %219 = vmatpush1.msra.mxu0 0.0
    %220 = vmatprep.subr.mxu0 0.0
    %221 = vmatpush1.msra.mxu0 0.0
    %222 = vmatprep.subr.mxu0 0.0
    %223 = vmatpush1.msra.mxu0 0.0
    %224 = vmatprep.subr.mxu0 0.0
    %225 = vmatpush1.msra.mxu0 0.0
    %226 = vmatprep.subr.mxu0 0.0
    %227 = vmatpush1.msra.mxu0 0.0
    %228 = vmatprep.mubr.f32.mxu0 0.0
    %v229 = vand.u32 %v57, 4294901760
    %230 = vmatmul.mubr.f32.gmra.mrb[0].mxu0 %v229
    %v231 = vpop.f32.mrb[0].mxu0
    %v232 = vadd.f32 %v136, %v231
    %v233 = vpop.f32.mrb[0].mxu0
    %234 = vdwg.mxu0
    %235 = vmatprep.subr.mxu0 0.0
    %v236 = vand.u32 %v27, 4294901760
    %v237 = vsub.f32 %v27, %v236
    %238 = vmatpush1.msra.mxu0 %v237
    %239 = vmatprep.subr.mxu0 0.0
    %v240 = vand.u32 %v28, 4294901760
    %v241 = vsub.f32 %v28, %v240
    %242 = vmatpush1.msra.mxu0 %v241
    %243 = vmatprep.subr.mxu0 0.0
    %v244 = vand.u32 %v29, 4294901760
    %v245 = vsub.f32 %v29, %v244
    %246 = vmatpush1.msra.mxu0 %v245
    %247 = vmatprep.subr.mxu0 0.0
    %v248 = vand.u32 %v30, 4294901760
    %v249 = vsub.f32 %v30, %v248
    %250 = vmatpush1.msra.mxu0 %v249
    %251 = vmatprep.subr.mxu0 0.0
    %v252 = vand.u32 %v31, 4294901760
    %v253 = vsub.f32 %v31, %v252
    %254 = vmatpush1.msra.mxu0 %v253
    %255 = vmatprep.subr.mxu0 0.0
    %256 = vmatpush1.msra.mxu0 0.0
    %257 = vmatprep.subr.mxu0 0.0
    %258 = vmatpush1.msra.mxu0 0.0
    %259 = vmatprep.subr.mxu0 0.0
    %260 = vmatpush1.msra.mxu0 0.0
    %261 = vmatprep.subr.mxu0 0.0
    %262 = vmatpush1.msra.mxu0 0.0
    %263 = vmatprep.subr.mxu0 0.0
    %264 = vmatpush1.msra.mxu0 0.0
    %265 = vmatprep.subr.mxu0 0.0
    %266 = vmatpush1.msra.mxu0 0.0
    %267 = vmatprep.subr.mxu0 0.0
    %268 = vmatpush1.msra.mxu0 0.0
    %269 = vmatprep.subr.mxu0 0.0
    %270 = vmatpush1.msra.mxu0 0.0
    %271 = vmatprep.subr.mxu0 0.0
    %272 = vmatpush1.msra.mxu0 0.0
    %273 = vmatprep.subr.mxu0 0.0
    %274 = vmatpush1.msra.mxu0 0.0
    %275 = vmatprep.subr.mxu0 0.0
    %276 = vmatpush1.msra.mxu0 0.0
    %277 = vmatprep.subr.mxu0 0.0
    %278 = vmatpush1.msra.mxu0 0.0
    %279 = vmatprep.subr.mxu0 0.0
    %280 = vmatpush1.msra.mxu0 0.0
    %281 = vmatprep.subr.mxu0 0.0
    %282 = vmatpush1.msra.mxu0 0.0
    %283 = vmatprep.subr.mxu0 0.0
    %284 = vmatpush1.msra.mxu0 0.0
    %285 = vmatprep.subr.mxu0 0.0
    %286 = vmatpush1.msra.mxu0 0.0
    %287 = vmatprep.subr.mxu0 0.0
    %288 = vmatpush1.msra.mxu0 0.0
    %289 = vmatprep.subr.mxu0 0.0
    %290 = vmatpush1.msra.mxu0 0.0
    %291 = vmatprep.subr.mxu0 0.0
    %292 = vmatpush1.msra.mxu0 0.0
    %293 = vmatprep.subr.mxu0 0.0
    %294 = vmatpush1.msra.mxu0 0.0
    %295 = vmatprep.subr.mxu0 0.0
    %296 = vmatpush1.msra.mxu0 0.0
    %297 = vmatprep.subr.mxu0 0.0
    %298 = vmatpush1.msra.mxu0 0.0
    %299 = vmatprep.subr.mxu0 0.0
    %300 = vmatpush1.msra.mxu0 0.0
    %301 = vmatprep.subr.mxu0 0.0
    %302 = vmatpush1.msra.mxu0 0.0
    %303 = vmatprep.subr.mxu0 0.0
    %304 = vmatpush1.msra.mxu0 0.0
    %305 = vmatprep.subr.mxu0 0.0
    %306 = vmatpush1.msra.mxu0 0.0
    %307 = vmatprep.subr.mxu0 0.0
    %308 = vmatpush1.msra.mxu0 0.0
    %309 = vmatprep.mubr.f32.mxu0 0.0
    %v310 = vand.u32 %v57, 4294901760
    %v311 = vsub.f32 %v57, %v310
    %312 = vmatmul.mubr.f32.gmra.mrb[0].mxu0 %v311
    %v313 = vpop.f32.mrb[0].mxu0
    %v314 = vadd.f32 %v232, %v313
    %v315 = vpop.f32.mrb[0].mxu0
    %316 = vdwg.mxu0
    %317 = vmatprep.subr.mxu0 0.0
    %v318 = vand.u32 %v27, 4294901760
    %319 = vmatpush1.msra.mxu0 %v318
    %320 = vmatprep.subr.mxu0 0.0
    %v321 = vand.u32 %v28, 4294901760
    %322 = vmatpush1.msra.mxu0 %v321
    %323 = vmatprep.subr.mxu0 0.0
    %v324 = vand.u32 %v29, 4294901760
    %325 = vmatpush1.msra.mxu0 %v324
    %326 = vmatprep.subr.mxu0 0.0
    %v327 = vand.u32 %v30, 4294901760
    %328 = vmatpush1.msra.mxu0 %v327
    %329 = vmatprep.subr.mxu0 0.0
    %v330 = vand.u32 %v31, 4294901760
    %331 = vmatpush1.msra.mxu0 %v330
    %332 = vmatprep.subr.mxu0 0.0
    %333 = vmatpush1.msra.mxu0 0.0
    %334 = vmatprep.subr.mxu0 0.0
    %335 = vmatpush1.msra.mxu0 0.0
    %336 = vmatprep.subr.mxu0 0.0
    %337 = vmatpush1.msra.mxu0 0.0
    %338 = vmatprep.subr.mxu0 0.0
    %339 = vmatpush1.msra.mxu0 0.0
    %340 = vmatprep.subr.mxu0 0.0
    %341 = vmatpush1.msra.mxu0 0.0
    %342 = vmatprep.subr.mxu0 0.0
    %343 = vmatpush1.msra.mxu0 0.0
    %344 = vmatprep.subr.mxu0 0.0
    %345 = vmatpush1.msra.mxu0 0.0
    %346 = vmatprep.subr.mxu0 0.0
    %347 = vmatpush1.msra.mxu0 0.0
    %348 = vmatprep.subr.mxu0 0.0
    %349 = vmatpush1.msra.mxu0 0.0
    %350 = vmatprep.subr.mxu0 0.0
    %351 = vmatpush1.msra.mxu0 0.0
    %352 = vmatprep.subr.mxu0 0.0
    %353 = vmatpush1.msra.mxu0 0.0
    %354 = vmatprep.subr.mxu0 0.0
    %355 = vmatpush1.msra.mxu0 0.0
    %356 = vmatprep.subr.mxu0 0.0
    %357 = vmatpush1.msra.mxu0 0.0
    %358 = vmatprep.subr.mxu0 0.0
    %359 = vmatpush1.msra.mxu0 0.0
    %360 = vmatprep.subr.mxu0 0.0
    %361 = vmatpush1.msra.mxu0 0.0
    %362 = vmatprep.subr.mxu0 0.0
    %363 = vmatpush1.msra.mxu0 0.0
    %364 = vmatprep.subr.mxu0 0.0
    %365 = vmatpush1.msra.mxu0 0.0
    %366 = vmatprep.subr.mxu0 0.0
    %367 = vmatpush1.msra.mxu0 0.0
    %368 = vmatprep.subr.mxu0 0.0
    %369 = vmatpush1.msra.mxu0 0.0
    %370 = vmatprep.subr.mxu0 0.0
    %371 = vmatpush1.msra.mxu0 0.0
    %372 = vmatprep.subr.mxu0 0.0
    %373 = vmatpush1.msra.mxu0 0.0
    %374 = vmatprep.subr.mxu0 0.0
    %375 = vmatpush1.msra.mxu0 0.0
    %376 = vmatprep.subr.mxu0 0.0
    %377 = vmatpush1.msra.mxu0 0.0
    %378 = vmatprep.subr.mxu0 0.0
    %379 = vmatpush1.msra.mxu0 0.0
    %380 = vmatprep.subr.mxu0 0.0
    %381 = vmatpush1.msra.mxu0 0.0
    %382 = vmatprep.subr.mxu0 0.0
    %383 = vmatpush1.msra.mxu0 0.0
    %384 = vmatprep.subr.mxu0 0.0
    %385 = vmatpush1.msra.mxu0 0.0
    %386 = vmatprep.mubr.f32.mxu0 0.0
    %v387 = vand.u32 %v57, 4294901760
    %v388 = vsub.f32 %v57, %v387
    %v389 = vand.u32 %v388, 4294901760
    %390 = vmatmul.mubr.f32.gmra.mrb[0].mxu0 %v389
    %v391 = vpop.f32.mrb[0].mxu0
    %v392 = vadd.f32 %v314, %v391
    %v393 = vpop.f32.mrb[0].mxu0
    %394 = vdwg.mxu0
    %395 = vmatprep.subr.mxu0 0.0
    %v396 = vand.u32 %v27, 4294901760
    %v397 = vsub.f32 %v27, %v396
    %v398 = vand.u32 %v397, 4294901760
    %399 = vmatpush1.msra.mxu0 %v398
    %400 = vmatprep.subr.mxu0 0.0
    %v401 = vand.u32 %v28, 4294901760
    %v402 = vsub.f32 %v28, %v401
    %v403 = vand.u32 %v402, 4294901760
    %404 = vmatpush1.msra.mxu0 %v403
    %405 = vmatprep.subr.mxu0 0.0
    %v406 = vand.u32 %v29, 4294901760
    %v407 = vsub.f32 %v29, %v406
    %v408 = vand.u32 %v407, 4294901760
    %409 = vmatpush1.msra.mxu0 %v408
    %410 = vmatprep.subr.mxu0 0.0
    %v411 = vand.u32 %v30, 4294901760
    %v412 = vsub.f32 %v30, %v411
    %v413 = vand.u32 %v412, 4294901760
    %414 = vmatpush1.msra.mxu0 %v413
    %415 = vmatprep.subr.mxu0 0.0
    %v416 = vand.u32 %v31, 4294901760
    %v417 = vsub.f32 %v31, %v416
    %v418 = vand.u32 %v417, 4294901760
    %419 = vmatpush1.msra.mxu0 %v418
    %420 = vmatprep.subr.mxu0 0.0
    %421 = vmatpush1.msra.mxu0 0.0
    %422 = vmatprep.subr.mxu0 0.0
    %423 = vmatpush1.msra.mxu0 0.0
    %424 = vmatprep.subr.mxu0 0.0
    %425 = vmatpush1.msra.mxu0 0.0
    %426 = vmatprep.subr.mxu0 0.0
    %427 = vmatpush1.msra.mxu0 0.0
    %428 = vmatprep.subr.mxu0 0.0
    %429 = vmatpush1.msra.mxu0 0.0
    %430 = vmatprep.subr.mxu0 0.0
    %431 = vmatpush1.msra.mxu0 0.0
    %432 = vmatprep.subr.mxu0 0.0
    %433 = vmatpush1.msra.mxu0 0.0
    %434 = vmatprep.subr.mxu0 0.0
    %435 = vmatpush1.msra.mxu0 0.0
    %436 = vmatprep.subr.mxu0 0.0
    %437 = vmatpush1.msra.mxu0 0.0
    %438 = vmatprep.subr.mxu0 0.0
    %439 = vmatpush1.msra.mxu0 0.0
    %440 = vmatprep.subr.mxu0 0.0
    %441 = vmatpush1.msra.mxu0 0.0
    %442 = vmatprep.subr.mxu0 0.0
    %443 = vmatpush1.msra.mxu0 0.0
    %444 = vmatprep.subr.mxu0 0.0
    %445 = vmatpush1.msra.mxu0 0.0
    %446 = vmatprep.subr.mxu0 0.0
    %447 = vmatpush1.msra.mxu0 0.0
    %448 = vmatprep.subr.mxu0 0.0
    %449 = vmatpush1.msra.mxu0 0.0
    %450 = vmatprep.subr.mxu0 0.0
    %451 = vmatpush1.msra.mxu0 0.0
    %452 = vmatprep.subr.mxu0 0.0
    %453 = vmatpush1.msra.mxu0 0.0
    %454 = vmatprep.subr.mxu0 0.0
    %455 = vmatpush1.msra.mxu0 0.0
    %456 = vmatprep.subr.mxu0 0.0
    %457 = vmatpush1.msra.mxu0 0.0
    %458 = vmatprep.subr.mxu0 0.0
    %459 = vmatpush1.msra.mxu0 0.0
    %460 = vmatprep.subr.mxu0 0.0
    %461 = vmatpush1.msra.mxu0 0.0
    %462 = vmatprep.subr.mxu0 0.0
    %463 = vmatpush1.msra.mxu0 0.0
    %464 = vmatprep.subr.mxu0 0.0
    %465 = vmatpush1.msra.mxu0 0.0
    %466 = vmatprep.subr.mxu0 0.0
    %467 = vmatpush1.msra.mxu0 0.0
    %468 = vmatprep.subr.mxu0 0.0
    %469 = vmatpush1.msra.mxu0 0.0
    %470 = vmatprep.subr.mxu0 0.0
    %471 = vmatpush1.msra.mxu0 0.0
    %472 = vmatprep.subr.mxu0 0.0
    %473 = vmatpush1.msra.mxu0 0.0
    %474 = vmatprep.mubr.f32.mxu0 0.0
    %v475 = vand.u32 %v57, 4294901760
    %476 = vmatmul.mubr.f32.gmra.mrb[0].mxu0 %v475
    %v477 = vpop.f32.mrb[0].mxu0
    %v478 = vadd.f32 %v392, %v477
    %v479 = vpop.f32.mrb[0].mxu0
    %480 = vdwg.mxu0
    %481 = vmatprep.subr.mxu0 0.0
    %v482 = vand.u32 %v27, 4294901760
    %483 = vmatpush1.msra.mxu0 %v482
    %484 = vmatprep.subr.mxu0 0.0
    %v485 = vand.u32 %v28, 4294901760
    %486 = vmatpush1.msra.mxu0 %v485
    %487 = vmatprep.subr.mxu0 0.0
    %v488 = vand.u32 %v29, 4294901760
    %489 = vmatpush1.msra.mxu0 %v488
    %490 = vmatprep.subr.mxu0 0.0
    %v491 = vand.u32 %v30, 4294901760
    %492 = vmatpush1.msra.mxu0 %v491
    %493 = vmatprep.subr.mxu0 0.0
    %v494 = vand.u32 %v31, 4294901760
    %495 = vmatpush1.msra.mxu0 %v494
    %496 = vmatprep.subr.mxu0 0.0
    %497 = vmatpush1.msra.mxu0 0.0
    %498 = vmatprep.subr.mxu0 0.0
    %499 = vmatpush1.msra.mxu0 0.0
    %500 = vmatprep.subr.mxu0 0.0
    %501 = vmatpush1.msra.mxu0 0.0
    %502 = vmatprep.subr.mxu0 0.0
    %503 = vmatpush1.msra.mxu0 0.0
    %504 = vmatprep.subr.mxu0 0.0
    %505 = vmatpush1.msra.mxu0 0.0
    %506 = vmatprep.subr.mxu0 0.0
    %507 = vmatpush1.msra.mxu0 0.0
    %508 = vmatprep.subr.mxu0 0.0
    %509 = vmatpush1.msra.mxu0 0.0
    %510 = vmatprep.subr.mxu0 0.0
    %511 = vmatpush1.msra.mxu0 0.0
    %512 = vmatprep.subr.mxu0 0.0
    %513 = vmatpush1.msra.mxu0 0.0
    %514 = vmatprep.subr.mxu0 0.0
    %515 = vmatpush1.msra.mxu0 0.0
    %516 = vmatprep.subr.mxu0 0.0
    %517 = vmatpush1.msra.mxu0 0.0
    %518 = vmatprep.subr.mxu0 0.0
    %519 = vmatpush1.msra.mxu0 0.0
    %520 = vmatprep.subr.mxu0 0.0
    %521 = vmatpush1.msra.mxu0 0.0
    %522 = vmatprep.subr.mxu0 0.0
    %523 = vmatpush1.msra.mxu0 0.0
    %524 = vmatprep.subr.mxu0 0.0
    %525 = vmatpush1.msra.mxu0 0.0
    %526 = vmatprep.subr.mxu0 0.0
    %527 = vmatpush1.msra.mxu0 0.0
    %528 = vmatprep.subr.mxu0 0.0
    %529 = vmatpush1.msra.mxu0 0.0
    %530 = vmatprep.subr.mxu0 0.0
    %531 = vmatpush1.msra.mxu0 0.0
    %532 = vmatprep.subr.mxu0 0.0
    %533 = vmatpush1.msra.mxu0 0.0
    %534 = vmatprep.subr.mxu0 0.0
    %535 = vmatpush1.msra.mxu0 0.0
    %536 = vmatprep.subr.mxu0 0.0
    %537 = vmatpush1.msra.mxu0 0.0
    %538 = vmatprep.subr.mxu0 0.0
    %539 = vmatpush1.msra.mxu0 0.0
    %540 = vmatprep.subr.mxu0 0.0
    %541 = vmatpush1.msra.mxu0 0.0
    %542 = vmatprep.subr.mxu0 0.0
    %543 = vmatpush1.msra.mxu0 0.0
    %544 = vmatprep.subr.mxu0 0.0
    %545 = vmatpush1.msra.mxu0 0.0
    %546 = vmatprep.subr.mxu0 0.0
    %547 = vmatpush1.msra.mxu0 0.0
    %548 = vmatprep.subr.mxu0 0.0
    %549 = vmatpush1.msra.mxu0 0.0
    %550 = vmatprep.mubr.f32.mxu0 0.0
    %v551 = vand.u32 %v57, 4294901760
    %552 = vmatmul.mubr.f32.gmra.mrb[0].mxu0 %v551
    %v553 = vpop.f32.mrb[0].mxu0
    %v554 = vadd.f32 %v478, %v553
    %v555 = vpop.f32.mrb[0].mxu0
    %556 = vdwg.mxu0
    %557 = vst [vmem:[#allocation5] sm:$0xff] %v554
    // Predicated region
    $region14: #{tpu_custom_call.1} parent=1 // pred_check
      _
    $region15: #{tpu_custom_call.1} parent=1 // pred_check_branch
      %559 = sbr.rel (0) target = $region17
    $region16: #{tpu_custom_call.1} parent=1 // pred_region
      %s561 = ssub.s32 128, 128
      %562 = vsyncadd [#allocation4], %s561
      %s564 = sshll.u32 [#allocation5], 4
      %s565 = int_to_ptr.vmem [resolvable:$true] %s564
      %567 = dma.vmem_to_hbm [thread:$0]  %s565, 128, %s2, [#allocation4]
    $region17: #{tpu_custom_call.1} parent=1 // pred_fallthru
      _
    // Predicated region
    $region18: #{tpu_custom_call.1} parent=1 // pred_check
      _
    $region19: #{tpu_custom_call.1} parent=1 // pred_check_branch
      %569 = sbr.rel (0) target = $region21
    $region20: #{tpu_custom_call.1} parent=1 // pred_region
      %570 = dma.done [#allocation4], 128
    $region21: #{tpu_custom_call.1} parent=1 // pred_fallthru
      _
    %571 = vsyncpa [#allocation3], 1
    %572 = vsyncpa [#allocation4], 1

// kernel: tpu_custom_call.1
$region0: #{tpu_custom_call.1}
  #allocation0 [shape = 'u32[]', space=smem, size = 0x4, offset = 0x4, fixed_abs, tag = 'smem constant byte address 0x4 - core index']
  #allocation1 [shape = 'u32[144,128]{1,0:T(1,128)}', space=vmem, size = 0x12000, scoped, tag = 'internal scratch']
  %s0 = inlined_call_operand.vmem [shape: s32[8,4], index: 0, kind: input, shape index: {}]
  %s1 = inlined_call_operand.hbm [shape: f32[40,128], index: 1, kind: input, shape index: {}]
  %s2 = inlined_call_operand.hbm [shape: f32[8,128], index: 2, kind: output, shape index: {}]
  %s3 = sld [smem:[#allocation0]]
  $region22: #{tpu_custom_call.1} parent=0
    _
  %s5 = ssub.s32 1, %s3
  %s6 = scalar_select 0, %s5, %s3
  $region1: #{tpu_custom_call.1} parent=0
    #allocation2 [shape = 'u8[20480]{0}', space=vmem, size = 0x5000, scoped, tag = 'input window, operand 1, single buffered']
    #allocation3 [shape = 's32[1]{0}', space=sflag, size = 0x4, scoped, tag = 'scoped memory for tpu_custom_call.1']
    #allocation4 [shape = 's32[1]{0}', space=sflag, size = 0x4, scoped, tag = 'scoped memory for tpu_custom_call.1']
    #allocation5 [shape = 'u8[4096]{0}', space=vmem, size = 0x1000, scoped, tag = 'output window, operand 0, single buffered']
    %7 = vsyncpa [#allocation3], 0
    %8 = vsyncpa [#allocation4], 0
    // Predicated region
    $region2: #{tpu_custom_call.1} parent=1 // pred_check
      _
    $region3: #{tpu_custom_call.1} parent=1 // pred_check_branch
      %10 = sbr.rel (0) target = $region5
    $region4: #{tpu_custom_call.1} parent=1 // pred_region
      _
    $region5: #{tpu_custom_call.1} parent=1 // pred_fallthru
      _
    // Predicated region
    $region6: #{tpu_custom_call.1} parent=1 // pred_check
      _
    $region7: #{tpu_custom_call.1} parent=1 // pred_check_branch
      %12 = sbr.rel (0) target = $region9
    $region8: #{tpu_custom_call.1} parent=1 // pred_region
      %s14 = ssub.s32 640, 640
      %15 = vsyncadd [#allocation3], %s14
      %s16 = sshll.u32 [#allocation2], 4
      %s17 = int_to_ptr.vmem [resolvable:$true] %s16
      %22 = dma.hbm_to_vmem [thread:$0]  %s1, 640, %s17, [#allocation3], 128, 128, 8
    $region9: #{tpu_custom_call.1} parent=1 // pred_fallthru
      _
    // Predicated region
    $region10: #{tpu_custom_call.1} parent=1 // pred_check
      _
    $region11: #{tpu_custom_call.1} parent=1 // pred_check_branch
      %24 = sbr.rel (0) target = $region13
    $region12: #{tpu_custom_call.1} parent=1 // pred_region
      %25 = dma.done [#allocation3], 640
    $region13: #{tpu_custom_call.1} parent=1 // pred_fallthru
      _
    %v26 = vld [vmem:[%s0] sm:$0xff]
    %v27 = vld [vmem:[#allocation2] sm:$0xff]
    %v28 = vld [vmem:[#allocation2 + $0x8] sm:$0xff]
    %v29 = vld [vmem:[#allocation2 + $0x10] sm:$0xff]
    %v30 = vld [vmem:[#allocation2 + $0x18] sm:$0xff]
    %v31 = vld [vmem:[#allocation2 + $0x20] sm:$0xff]
    %v32 = vlaneseq
    %v33 = vand.u32 %v32, 127
    %34 = vset.pattern.permute.xlu0 0
    %35 = vperm.xlu0 %34, %v26
    %v36 = vpop.permute.xlu0 %35
    %vm37 = vcmp.eq.s32.totalorder %v33, %v36
    %38 = vset.pattern.permute.xlu0 1
    %39 = vperm.xlu0 %38, %v26
    %v40 = vpop.permute.xlu0 %39
    %vm41 = vcmp.eq.s32.totalorder %v33, %v40
    %vm42 = vmor %vm37, %vm41
    %43 = vset.pattern.permute.xlu0 2
    %44 = vperm.xlu0 %43, %v26
    %v45 = vpop.permute.xlu0 %44
    %vm46 = vcmp.eq.s32.totalorder %v33, %v45
    %vm47 = vmor %vm42, %vm46
    %48 = vset.pattern.permute.xlu0 3
    %49 = vperm.xlu0 %48, %v26
    %v50 = vpop.permute.xlu0 %49
    %vm51 = vcmp.eq.s32.totalorder %v33, %v50
    %vm52 = vmor %vm47, %vm51
    %v53 = vsel %vm52, 1, 0
    %v54 = vcvt.s32.f32 %v53
    %vm55 = vcmask 326656
    %v57 = vsel %vm55, %v54, 0
    %59 = vmatprep.subr.mxu0 0.0
    %v60 = vand.u32 %v27, 4294901760
    %61 = vmatpush1.msra.mxu0 %v60
    %62 = vmatprep.subr.mxu0 0.0
    %v63 = vand.u32 %v28, 4294901760
    %64 = vmatpush1.msra.mxu0 %v63
    %65 = vmatprep.subr.mxu0 0.0
    %v66 = vand.u32 %v29, 4294901760
    %67 = vmatpush1.msra.mxu0 %v66
    %68 = vmatprep.subr.mxu0 0.0
    %v69 = vand.u32 %v30, 4294901760
    %70 = vmatpush1.msra.mxu0 %v69
    %71 = vmatprep.subr.mxu0 0.0
    %v72 = vand.u32 %v31, 4294901760
    %73 = vmatpush1.msra.mxu0 %v72
    %74 = vmatprep.subr.mxu0 0.0
    %75 = vmatpush1.msra.mxu0 0.0
    %76 = vmatprep.subr.mxu0 0.0
    %77 = vmatpush1.msra.mxu0 0.0
    %78 = vmatprep.subr.mxu0 0.0
    %79 = vmatpush1.msra.mxu0 0.0
    %80 = vmatprep.subr.mxu0 0.0
    %81 = vmatpush1.msra.mxu0 0.0
    %82 = vmatprep.subr.mxu0 0.0
    %83 = vmatpush1.msra.mxu0 0.0
    %84 = vmatprep.subr.mxu0 0.0
    %85 = vmatpush1.msra.mxu0 0.0
    %86 = vmatprep.subr.mxu0 0.0
    %87 = vmatpush1.msra.mxu0 0.0
    %88 = vmatprep.subr.mxu0 0.0
    %89 = vmatpush1.msra.mxu0 0.0
    %90 = vmatprep.subr.mxu0 0.0
    %91 = vmatpush1.msra.mxu0 0.0
    %92 = vmatprep.subr.mxu0 0.0
    %93 = vmatpush1.msra.mxu0 0.0
    %94 = vmatprep.subr.mxu0 0.0
    %95 = vmatpush1.msra.mxu0 0.0
    %96 = vmatprep.subr.mxu0 0.0
    %97 = vmatpush1.msra.mxu0 0.0
    %98 = vmatprep.subr.mxu0 0.0
    %99 = vmatpush1.msra.mxu0 0.0
    %100 = vmatprep.subr.mxu0 0.0
    %101 = vmatpush1.msra.mxu0 0.0
    %102 = vmatprep.subr.mxu0 0.0
    %103 = vmatpush1.msra.mxu0 0.0
    %104 = vmatprep.subr.mxu0 0.0
    %105 = vmatpush1.msra.mxu0 0.0
    %106 = vmatprep.subr.mxu0 0.0
    %107 = vmatpush1.msra.mxu0 0.0
    %108 = vmatprep.subr.mxu0 0.0
    %109 = vmatpush1.msra.mxu0 0.0
    %110 = vmatprep.subr.mxu0 0.0
    %111 = vmatpush1.msra.mxu0 0.0
    %112 = vmatprep.subr.mxu0 0.0
    %113 = vmatpush1.msra.mxu0 0.0
    %114 = vmatprep.subr.mxu0 0.0
    %115 = vmatpush1.msra.mxu0 0.0
    %116 = vmatprep.subr.mxu0 0.0
    %117 = vmatpush1.msra.mxu0 0.0
    %118 = vmatprep.subr.mxu0 0.0
    %119 = vmatpush1.msra.mxu0 0.0
    %120 = vmatprep.subr.mxu0 0.0
    %121 = vmatpush1.msra.mxu0 0.0
    %122 = vmatprep.subr.mxu0 0.0
    %123 = vmatpush1.msra.mxu0 0.0
    %124 = vmatprep.subr.mxu0 0.0
    %125 = vmatpush1.msra.mxu0 0.0
    %126 = vmatprep.subr.mxu0 0.0
    %127 = vmatpush1.msra.mxu0 0.0
    %128 = vmatprep.mubr.f32.mxu0 0.0
    %v129 = vand.u32 %v57, 4294901760
    %v130 = vsub.f32 %v57, %v129
    %v131 = vand.u32 %v130, 4294901760
    %v132 = vsub.f32 %v130, %v131
    %v133 = vand.u32 %v132, 4294901760
    %134 = vmatmul.mubr.f32.gmra.mrb[0].mxu0 %v133
    %v135 = vpop.f32.mrb[0].mxu0
    %v136 = vadd.f32 0.0, %v135
    %v137 = vpop.f32.mrb[0].mxu0
    %138 = vdwg.mxu0
    %139 = vmatprep.subr.mxu0 0.0
    %v140 = vand.u32 %v27, 4294901760
    %v141 = vsub.f32 %v27, %v140
    %v142 = vand.u32 %v141, 4294901760
    %v143 = vsub.f32 %v141, %v142
    %v144 = vand.u32 %v143, 4294901760
    %145 = vmatpush1.msra.mxu0 %v144
    %146 = vmatprep.subr.mxu0 0.0
    %v147 = vand.u32 %v28, 4294901760
    %v148 = vsub.f32 %v28, %v147
    %v149 = vand.u32 %v148, 4294901760
    %v150 = vsub.f32 %v148, %v149
    %v151 = vand.u32 %v150, 4294901760
    %152 = vmatpush1.msra.mxu0 %v151
    %153 = vmatprep.subr.mxu0 0.0
    %v154 = vand.u32 %v29, 4294901760
    %v155 = vsub.f32 %v29, %v154
    %v156 = vand.u32 %v155, 4294901760
    %v157 = vsub.f32 %v155, %v156
    %v158 = vand.u32 %v157, 4294901760
    %159 = vmatpush1.msra.mxu0 %v158
    %160 = vmatprep.subr.mxu0 0.0
    %v161 = vand.u32 %v30, 4294901760
    %v162 = vsub.f32 %v30, %v161
    %v163 = vand.u32 %v162, 4294901760
    %v164 = vsub.f32 %v162, %v163
    %v165 = vand.u32 %v164, 4294901760
    %166 = vmatpush1.msra.mxu0 %v165
    %167 = vmatprep.subr.mxu0 0.0
    %v168 = vand.u32 %v31, 4294901760
    %v169 = vsub.f32 %v31, %v168
    %v170 = vand.u32 %v169, 4294901760
    %v171 = vsub.f32 %v169, %v170
    %v172 = vand.u32 %v171, 4294901760
    %173 = vmatpush1.msra.mxu0 %v172
    %174 = vmatprep.subr.mxu0 0.0
    %175 = vmatpush1.msra.mxu0 0.0
    %176 = vmatprep.subr.mxu0 0.0
    %177 = vmatpush1.msra.mxu0 0.0
    %178 = vmatprep.subr.mxu0 0.0
    %179 = vmatpush1.msra.mxu0 0.0
    %180 = vmatprep.subr.mxu0 0.0
    %181 = vmatpush1.msra.mxu0 0.0
    %182 = vmatprep.subr.mxu0 0.0
    %183 = vmatpush1.msra.mxu0 0.0
    %184 = vmatprep.subr.mxu0 0.0
    %185 = vmatpush1.msra.mxu0 0.0
    %186 = vmatprep.subr.mxu0 0.0
    %187 = vmatpush1.msra.mxu0 0.0
    %188 = vmatprep.subr.mxu0 0.0
    %189 = vmatpush1.msra.mxu0 0.0
    %190 = vmatprep.subr.mxu0 0.0
    %191 = vmatpush1.msra.mxu0 0.0
    %192 = vmatprep.subr.mxu0 0.0
    %193 = vmatpush1.msra.mxu0 0.0
    %194 = vmatprep.subr.mxu0 0.0
    %195 = vmatpush1.msra.mxu0 0.0
    %196 = vmatprep.subr.mxu0 0.0
    %197 = vmatpush1.msra.mxu0 0.0
    %198 = vmatprep.subr.mxu0 0.0
    %199 = vmatpush1.msra.mxu0 0.0
    %200 = vmatprep.subr.mxu0 0.0
    %201 = vmatpush1.msra.mxu0 0.0
    %202 = vmatprep.subr.mxu0 0.0
    %203 = vmatpush1.msra.mxu0 0.0
    %204 = vmatprep.subr.mxu0 0.0
    %205 = vmatpush1.msra.mxu0 0.0
    %206 = vmatprep.subr.mxu0 0.0
    %207 = vmatpush1.msra.mxu0 0.0
    %208 = vmatprep.subr.mxu0 0.0
    %209 = vmatpush1.msra.mxu0 0.0
    %210 = vmatprep.subr.mxu0 0.0
    %211 = vmatpush1.msra.mxu0 0.0
    %212 = vmatprep.subr.mxu0 0.0
    %213 = vmatpush1.msra.mxu0 0.0
    %214 = vmatprep.subr.mxu0 0.0
    %215 = vmatpush1.msra.mxu0 0.0
    %216 = vmatprep.subr.mxu0 0.0
    %217 = vmatpush1.msra.mxu0 0.0
    %218 = vmatprep.subr.mxu0 0.0
    %219 = vmatpush1.msra.mxu0 0.0
    %220 = vmatprep.subr.mxu0 0.0
    %221 = vmatpush1.msra.mxu0 0.0
    %222 = vmatprep.subr.mxu0 0.0
    %223 = vmatpush1.msra.mxu0 0.0
    %224 = vmatprep.subr.mxu0 0.0
    %225 = vmatpush1.msra.mxu0 0.0
    %226 = vmatprep.subr.mxu0 0.0
    %227 = vmatpush1.msra.mxu0 0.0
    %228 = vmatprep.mubr.f32.mxu0 0.0
    %v229 = vand.u32 %v57, 4294901760
    %230 = vmatmul.mubr.f32.gmra.mrb[0].mxu0 %v229
    %v231 = vpop.f32.mrb[0].mxu0
    %v232 = vadd.f32 %v136, %v231
    %v233 = vpop.f32.mrb[0].mxu0
    %234 = vdwg.mxu0
    %235 = vmatprep.subr.mxu0 0.0
    %v236 = vand.u32 %v27, 4294901760
    %v237 = vsub.f32 %v27, %v236
    %238 = vmatpush1.msra.mxu0 %v237
    %239 = vmatprep.subr.mxu0 0.0
    %v240 = vand.u32 %v28, 4294901760
    %v241 = vsub.f32 %v28, %v240
    %242 = vmatpush1.msra.mxu0 %v241
    %243 = vmatprep.subr.mxu0 0.0
    %v244 = vand.u32 %v29, 4294901760
    %v245 = vsub.f32 %v29, %v244
    %246 = vmatpush1.msra.mxu0 %v245
    %247 = vmatprep.subr.mxu0 0.0
    %v248 = vand.u32 %v30, 4294901760
    %v249 = vsub.f32 %v30, %v248
    %250 = vmatpush1.msra.mxu0 %v249
    %251 = vmatprep.subr.mxu0 0.0
    %v252 = vand.u32 %v31, 4294901760
    %v253 = vsub.f32 %v31, %v252
    %254 = vmatpush1.msra.mxu0 %v253
    %255 = vmatprep.subr.mxu0 0.0
    %256 = vmatpush1.msra.mxu0 0.0
    %257 = vmatprep.subr.mxu0 0.0
    %258 = vmatpush1.msra.mxu0 0.0
    %259 = vmatprep.subr.mxu0 0.0
    %260 = vmatpush1.msra.mxu0 0.0
    %261 = vmatprep.subr.mxu0 0.0
    %262 = vmatpush1.msra.mxu0 0.0
    %263 = vmatprep.subr.mxu0 0.0
    %264 = vmatpush1.msra.mxu0 0.0
    %265 = vmatprep.subr.mxu0 0.0
    %266 = vmatpush1.msra.mxu0 0.0
    %267 = vmatprep.subr.mxu0 0.0
    %268 = vmatpush1.msra.mxu0 0.0
    %269 = vmatprep.subr.mxu0 0.0
    %270 = vmatpush1.msra.mxu0 0.0
    %271 = vmatprep.subr.mxu0 0.0
    %272 = vmatpush1.msra.mxu0 0.0
    %273 = vmatprep.subr.mxu0 0.0
    %274 = vmatpush1.msra.mxu0 0.0
    %275 = vmatprep.subr.mxu0 0.0
    %276 = vmatpush1.msra.mxu0 0.0
    %277 = vmatprep.subr.mxu0 0.0
    %278 = vmatpush1.msra.mxu0 0.0
    %279 = vmatprep.subr.mxu0 0.0
    %280 = vmatpush1.msra.mxu0 0.0
    %281 = vmatprep.subr.mxu0 0.0
    %282 = vmatpush1.msra.mxu0 0.0
    %283 = vmatprep.subr.mxu0 0.0
    %284 = vmatpush1.msra.mxu0 0.0
    %285 = vmatprep.subr.mxu0 0.0
    %286 = vmatpush1.msra.mxu0 0.0
    %287 = vmatprep.subr.mxu0 0.0
    %288 = vmatpush1.msra.mxu0 0.0
    %289 = vmatprep.subr.mxu0 0.0
    %290 = vmatpush1.msra.mxu0 0.0
    %291 = vmatprep.subr.mxu0 0.0
    %292 = vmatpush1.msra.mxu0 0.0
    %293 = vmatprep.subr.mxu0 0.0
    %294 = vmatpush1.msra.mxu0 0.0
    %295 = vmatprep.subr.mxu0 0.0
    %296 = vmatpush1.msra.mxu0 0.0
    %297 = vmatprep.subr.mxu0 0.0
    %298 = vmatpush1.msra.mxu0 0.0
    %299 = vmatprep.subr.mxu0 0.0
    %300 = vmatpush1.msra.mxu0 0.0
    %301 = vmatprep.subr.mxu0 0.0
    %302 = vmatpush1.msra.mxu0 0.0
    %303 = vmatprep.subr.mxu0 0.0
    %304 = vmatpush1.msra.mxu0 0.0
    %305 = vmatprep.subr.mxu0 0.0
    %306 = vmatpush1.msra.mxu0 0.0
    %307 = vmatprep.subr.mxu0 0.0
    %308 = vmatpush1.msra.mxu0 0.0
    %309 = vmatprep.mubr.f32.mxu0 0.0
    %v310 = vand.u32 %v57, 4294901760
    %v311 = vsub.f32 %v57, %v310
    %312 = vmatmul.mubr.f32.gmra.mrb[0].mxu0 %v311
    %v313 = vpop.f32.mrb[0].mxu0
    %v314 = vadd.f32 %v232, %v313
    %v315 = vpop.f32.mrb[0].mxu0
    %316 = vdwg.mxu0
    %317 = vmatprep.subr.mxu0 0.0
    %v318 = vand.u32 %v27, 4294901760
    %319 = vmatpush1.msra.mxu0 %v318
    %320 = vmatprep.subr.mxu0 0.0
    %v321 = vand.u32 %v28, 4294901760
    %322 = vmatpush1.msra.mxu0 %v321
    %323 = vmatprep.subr.mxu0 0.0
    %v324 = vand.u32 %v29, 4294901760
    %325 = vmatpush1.msra.mxu0 %v324
    %326 = vmatprep.subr.mxu0 0.0
    %v327 = vand.u32 %v30, 4294901760
    %328 = vmatpush1.msra.mxu0 %v327
    %329 = vmatprep.subr.mxu0 0.0
    %v330 = vand.u32 %v31, 4294901760
    %331 = vmatpush1.msra.mxu0 %v330
    %332 = vmatprep.subr.mxu0 0.0
    %333 = vmatpush1.msra.mxu0 0.0
    %334 = vmatprep.subr.mxu0 0.0
    %335 = vmatpush1.msra.mxu0 0.0
    %336 = vmatprep.subr.mxu0 0.0
    %337 = vmatpush1.msra.mxu0 0.0
    %338 = vmatprep.subr.mxu0 0.0
    %339 = vmatpush1.msra.mxu0 0.0
    %340 = vmatprep.subr.mxu0 0.0
    %341 = vmatpush1.msra.mxu0 0.0
    %342 = vmatprep.subr.mxu0 0.0
    %343 = vmatpush1.msra.mxu0 0.0
    %344 = vmatprep.subr.mxu0 0.0
    %345 = vmatpush1.msra.mxu0 0.0
    %346 = vmatprep.subr.mxu0 0.0
    %347 = vmatpush1.msra.mxu0 0.0
    %348 = vmatprep.subr.mxu0 0.0
    %349 = vmatpush1.msra.mxu0 0.0
    %350 = vmatprep.subr.mxu0 0.0
    %351 = vmatpush1.msra.mxu0 0.0
    %352 = vmatprep.subr.mxu0 0.0
    %353 = vmatpush1.msra.mxu0 0.0
    %354 = vmatprep.subr.mxu0 0.0
    %355 = vmatpush1.msra.mxu0 0.0
    %356 = vmatprep.subr.mxu0 0.0
    %357 = vmatpush1.msra.mxu0 0.0
    %358 = vmatprep.subr.mxu0 0.0
    %359 = vmatpush1.msra.mxu0 0.0
    %360 = vmatprep.subr.mxu0 0.0
    %361 = vmatpush1.msra.mxu0 0.0
    %362 = vmatprep.subr.mxu0 0.0
    %363 = vmatpush1.msra.mxu0 0.0
    %364 = vmatprep.subr.mxu0 0.0
    %365 = vmatpush1.msra.mxu0 0.0
    %366 = vmatprep.subr.mxu0 0.0
    %367 = vmatpush1.msra.mxu0 0.0
    %368 = vmatprep.subr.mxu0 0.0
    %369 = vmatpush1.msra.mxu0 0.0
    %370 = vmatprep.subr.mxu0 0.0
    %371 = vmatpush1.msra.mxu0 0.0
    %372 = vmatprep.subr.mxu0 0.0
    %373 = vmatpush1.msra.mxu0 0.0
    %374 = vmatprep.subr.mxu0 0.0
    %375 = vmatpush1.msra.mxu0 0.0
    %376 = vmatprep.subr.mxu0 0.0
    %377 = vmatpush1.msra.mxu0 0.0
    %378 = vmatprep.subr.mxu0 0.0
    %379 = vmatpush1.msra.mxu0 0.0
    %380 = vmatprep.subr.mxu0 0.0
    %381 = vmatpush1.msra.mxu0 0.0
    %382 = vmatprep.subr.mxu0 0.0
    %383 = vmatpush1.msra.mxu0 0.0
    %384 = vmatprep.subr.mxu0 0.0
    %385 = vmatpush1.msra.mxu0 0.0
    %386 = vmatprep.mubr.f32.mxu0 0.0
    %v387 = vand.u32 %v57, 4294901760
    %v388 = vsub.f32 %v57, %v387
    %v389 = vand.u32 %v388, 4294901760
    %390 = vmatmul.mubr.f32.gmra.mrb[0].mxu0 %v389
    %v391 = vpop.f32.mrb[0].mxu0
    %v392 = vadd.f32 %v314, %v391
    %v393 = vpop.f32.mrb[0].mxu0
    %394 = vdwg.mxu0
    %395 = vmatprep.subr.mxu0 0.0
    %v396 = vand.u32 %v27, 4294901760
    %v397 = vsub.f32 %v27, %v396
    %v398 = vand.u32 %v397, 4294901760
    %399 = vmatpush1.msra.mxu0 %v398
    %400 = vmatprep.subr.mxu0 0.0
    %v401 = vand.u32 %v28, 4294901760
    %v402 = vsub.f32 %v28, %v401
    %v403 = vand.u32 %v402, 4294901760
    %404 = vmatpush1.msra.mxu0 %v403
    %405 = vmatprep.subr.mxu0 0.0
    %v406 = vand.u32 %v29, 4294901760
    %v407 = vsub.f32 %v29, %v406
    %v408 = vand.u32 %v407, 4294901760
    %409 = vmatpush1.msra.mxu0 %v408
    %410 = vmatprep.subr.mxu0 0.0
    %v411 = vand.u32 %v30, 4294901760
    %v412 = vsub.f32 %v30, %v411
    %v413 = vand.u32 %v412, 4294901760
    %414 = vmatpush1.msra.mxu0 %v413
    %415 = vmatprep.subr.mxu0 0.0
    %v416 = vand.u32 %v31, 4294901760
    %v417 = vsub.f32 %v31, %v416
    %v418 = vand.u32 %v417, 4294901760
    %419 = vmatpush1.msra.mxu0 %v418
    %420 = vmatprep.subr.mxu0 0.0
    %421 = vmatpush1.msra.mxu0 0.0
    %422 = vmatprep.subr.mxu0 0.0
    %423 = vmatpush1.msra.mxu0 0.0
    %424 = vmatprep.subr.mxu0 0.0
    %425 = vmatpush1.msra.mxu0 0.0
    %426 = vmatprep.subr.mxu0 0.0
    %427 = vmatpush1.msra.mxu0 0.0
    %428 = vmatprep.subr.mxu0 0.0
    %429 = vmatpush1.msra.mxu0 0.0
    %430 = vmatprep.subr.mxu0 0.0
    %431 = vmatpush1.msra.mxu0 0.0
    %432 = vmatprep.subr.mxu0 0.0
    %433 = vmatpush1.msra.mxu0 0.0
    %434 = vmatprep.subr.mxu0 0.0
    %435 = vmatpush1.msra.mxu0 0.0
    %436 = vmatprep.subr.mxu0 0.0
    %437 = vmatpush1.msra.mxu0 0.0
    %438 = vmatprep.subr.mxu0 0.0
    %439 = vmatpush1.msra.mxu0 0.0
    %440 = vmatprep.subr.mxu0 0.0
    %441 = vmatpush1.msra.mxu0 0.0
    %442 = vmatprep.subr.mxu0 0.0
    %443 = vmatpush1.msra.mxu0 0.0
    %444 = vmatprep.subr.mxu0 0.0
    %445 = vmatpush1.msra.mxu0 0.0
    %446 = vmatprep.subr.mxu0 0.0
    %447 = vmatpush1.msra.mxu0 0.0
    %448 = vmatprep.subr.mxu0 0.0
    %449 = vmatpush1.msra.mxu0 0.0
    %450 = vmatprep.subr.mxu0 0.0
    %451 = vmatpush1.msra.mxu0 0.0
    %452 = vmatprep.subr.mxu0 0.0
    %453 = vmatpush1.msra.mxu0 0.0
    %454 = vmatprep.subr.mxu0 0.0
    %455 = vmatpush1.msra.mxu0 0.0
    %456 = vmatprep.subr.mxu0 0.0
    %457 = vmatpush1.msra.mxu0 0.0
    %458 = vmatprep.subr.mxu0 0.0
    %459 = vmatpush1.msra.mxu0 0.0
    %460 = vmatprep.subr.mxu0 0.0
    %461 = vmatpush1.msra.mxu0 0.0
    %462 = vmatprep.subr.mxu0 0.0
    %463 = vmatpush1.msra.mxu0 0.0
    %464 = vmatprep.subr.mxu0 0.0
    %465 = vmatpush1.msra.mxu0 0.0
    %466 = vmatprep.subr.mxu0 0.0
    %467 = vmatpush1.msra.mxu0 0.0
    %468 = vmatprep.subr.mxu0 0.0
    %469 = vmatpush1.msra.mxu0 0.0
    %470 = vmatprep.subr.mxu0 0.0
    %471 = vmatpush1.msra.mxu0 0.0
    %472 = vmatprep.subr.mxu0 0.0
    %473 = vmatpush1.msra.mxu0 0.0
    %474 = vmatprep.mubr.f32.mxu0 0.0
    %v475 = vand.u32 %v57, 4294901760
    %476 = vmatmul.mubr.f32.gmra.mrb[0].mxu0 %v475
    %v477 = vpop.f32.mrb[0].mxu0
    %v478 = vadd.f32 %v392, %v477
    %v479 = vpop.f32.mrb[0].mxu0
    %480 = vdwg.mxu0
    %481 = vmatprep.subr.mxu0 0.0
    %v482 = vand.u32 %v27, 4294901760
    %483 = vmatpush1.msra.mxu0 %v482
    %484 = vmatprep.subr.mxu0 0.0
    %v485 = vand.u32 %v28, 4294901760
    %486 = vmatpush1.msra.mxu0 %v485
    %487 = vmatprep.subr.mxu0 0.0
    %v488 = vand.u32 %v29, 4294901760
    %489 = vmatpush1.msra.mxu0 %v488
    %490 = vmatprep.subr.mxu0 0.0
    %v491 = vand.u32 %v30, 4294901760
    %492 = vmatpush1.msra.mxu0 %v491
    %493 = vmatprep.subr.mxu0 0.0
    %v494 = vand.u32 %v31, 4294901760
    %495 = vmatpush1.msra.mxu0 %v494
    %496 = vmatprep.subr.mxu0 0.0
    %497 = vmatpush1.msra.mxu0 0.0
    %498 = vmatprep.subr.mxu0 0.0
    %499 = vmatpush1.msra.mxu0 0.0
    %500 = vmatprep.subr.mxu0 0.0
    %501 = vmatpush1.msra.mxu0 0.0
    %502 = vmatprep.subr.mxu0 0.0
    %503 = vmatpush1.msra.mxu0 0.0
    %504 = vmatprep.subr.mxu0 0.0
    %505 = vmatpush1.msra.mxu0 0.0
    %506 = vmatprep.subr.mxu0 0.0
    %507 = vmatpush1.msra.mxu0 0.0
    %508 = vmatprep.subr.mxu0 0.0
    %509 = vmatpush1.msra.mxu0 0.0
    %510 = vmatprep.subr.mxu0 0.0
    %511 = vmatpush1.msra.mxu0 0.0
    %512 = vmatprep.subr.mxu0 0.0
    %513 = vmatpush1.msra.mxu0 0.0
    %514 = vmatprep.subr.mxu0 0.0
    %515 = vmatpush1.msra.mxu0 0.0
    %516 = vmatprep.subr.mxu0 0.0
    %517 = vmatpush1.msra.mxu0 0.0
    %518 = vmatprep.subr.mxu0 0.0
    %519 = vmatpush1.msra.mxu0 0.0
    %520 = vmatprep.subr.mxu0 0.0
    %521 = vmatpush1.msra.mxu0 0.0
    %522 = vmatprep.subr.mxu0 0.0
    %523 = vmatpush1.msra.mxu0 0.0
    %524 = vmatprep.subr.mxu0 0.0
    %525 = vmatpush1.msra.mxu0 0.0
    %526 = vmatprep.subr.mxu0 0.0
    %527 = vmatpush1.msra.mxu0 0.0
    %528 = vmatprep.subr.mxu0 0.0
    %529 = vmatpush1.msra.mxu0 0.0
    %530 = vmatprep.subr.mxu0 0.0
    %531 = vmatpush1.msra.mxu0 0.0
    %532 = vmatprep.subr.mxu0 0.0
    %533 = vmatpush1.msra.mxu0 0.0
    %534 = vmatprep.subr.mxu0 0.0
    %535 = vmatpush1.msra.mxu0 0.0
    %536 = vmatprep.subr.mxu0 0.0
    %537 = vmatpush1.msra.mxu0 0.0
    %538 = vmatprep.subr.mxu0 0.0
    %539 = vmatpush1.msra.mxu0 0.0
    %540 = vmatprep.subr.mxu0 0.0
    %541 = vmatpush1.msra.mxu0 0.0
    %542 = vmatprep.subr.mxu0 0.0
    %543 = vmatpush1.msra.mxu0 0.0
    %544 = vmatprep.subr.mxu0 0.0
    %545 = vmatpush1.msra.mxu0 0.0
    %546 = vmatprep.subr.mxu0 0.0
    %547 = vmatpush1.msra.mxu0 0.0
    %548 = vmatprep.subr.mxu0 0.0
    %549 = vmatpush1.msra.mxu0 0.0
    %550 = vmatprep.mubr.f32.mxu0 0.0
    %v551 = vand.u32 %v57, 4294901760
    %552 = vmatmul.mubr.f32.gmra.mrb[0].mxu0 %v551
    %v553 = vpop.f32.mrb[0].mxu0
    %v554 = vadd.f32 %v478, %v553
    %v555 = vpop.f32.mrb[0].mxu0
    %556 = vdwg.mxu0
    %557 = vst [vmem:[#allocation5] sm:$0xff] %v554
    // Predicated region
    $region14: #{tpu_custom_call.1} parent=1 // pred_check
      _
    $region15: #{tpu_custom_call.1} parent=1 // pred_check_branch
      %559 = sbr.rel (0) target = $region17
    $region16: #{tpu_custom_call.1} parent=1 // pred_region
      %s561 = ssub.s32 128, 128
      %562 = vsyncadd [#allocation4], %s561
      %s564 = sshll.u32 [#allocation5], 4
      %s565 = int_to_ptr.vmem [resolvable:$true] %s564
      %567 = dma.vmem_to_hbm [thread:$0]  %s565, 128, %s2, [#allocation4]
    $region17: #{tpu_custom_call.1} parent=1 // pred_fallthru
      _
    // Predicated region
    $region18: #{tpu_custom_call.1} parent=1 // pred_check
      _
    $region19: #{tpu_custom_call.1} parent=1 // pred_check_branch
      %569 = sbr.rel (0) target = $region21
    $region20: #{tpu_custom_call.1} parent=1 // pred_region
      %570 = dma.done [#allocation4], 128
    $region21: #{tpu_custom_call.1} parent=1 // pred_fallthru
      _
    %571 = vsyncpa [#allocation3], 1
    %572 = vsyncpa [#allocation4], 1

</llo_original>
